<compile_context>
chip_gen: v5e
topology: v5e:2x2
jax: 0.10.0
libtpu: 0.0.40
codegen_flags: <defaults>
</compile_context>

<pallas_src>
import functools

import jax
import jax.numpy as jnp
from jax import lax
from jax.experimental import pallas as pl
from jax.experimental.pallas import tpu as pltpu

EPS = 1e-5


# ----------------------------- in-kernel helpers -----------------------------

def _bn_train(y, inv_n):
    """BatchNorm1d (training mode, gamma=1/beta=0) on a (B, C, L) slab.

    Per-channel stats over batch*length, biased variance, single-pass
    moments, variance clamped at 0 against f32 cancellation.
    """
    s = jnp.sum(y, axis=2, keepdims=True)            # (B, C, 1)  lane reduce
    s = jnp.sum(s, axis=0, keepdims=True)            # (1, C, 1)
    ss = jnp.sum(y * y, axis=2, keepdims=True)
    ss = jnp.sum(ss, axis=0, keepdims=True)
    mean = s * inv_n
    var = jnp.maximum(ss * inv_n - mean * mean, 0.0)
    return (y - mean) * lax.rsqrt(var + EPS)


def _batched_conv1x1(w, x, matmul_dtype):
    """Apply a (Co, Ci) k=1 conv to a (B, Ci, L) slab as a batched MXU matmul."""
    b = x.shape[0]
    wb = jnp.broadcast_to(w.astype(matmul_dtype), (b,) + w.shape)   # (B, Co, Ci)
    return lax.dot_general(
        wb, x.astype(matmul_dtype),
        dimension_numbers=(((2,), (1,)), ((0,), (0,))),
        preferred_element_type=jnp.float32,
    )                                                               # (B, Co, L) f32


# ------------------------------- Pallas kernel --------------------------------

def tf_decoder_kernel(x_ref, w1_ref, w2_ref, out_ref, *, inv_n, matmul_dtype):
    x = x_ref[...]                                                  # (B, Cin, L)

    # projection: Conv1d(k=1) -> BatchNorm1d -> ReLU    (bias cancelled by BN)
    h = _batched_conv1x1(w1_ref[...], x, matmul_dtype)              # (B, mid, L)
    h = jnp.maximum(_bn_train(h, inv_n), 0.0)

    # reconstruction: Conv1d(k=1) -> BatchNorm1d        (bias cancelled by BN)
    y = _batched_conv1x1(w2_ref[...], h, matmul_dtype)              # (B, Cout, L)
    out_ref[...] = _bn_train(y, inv_n).astype(out_ref.dtype)


# --------------------------------- wrapper ------------------------------------

def tf_decoder_forward(x, w1, w2, *, matmul_dtype=jnp.float32):
    """x: (B, Cin, L) f32; w1: (mid, Cin); w2: (Cout, mid). Returns (B, Cout, L)."""
    B, Cin, L = x.shape
    mid = w1.shape[0]
    Cout = w2.shape[0]

    flops = 2 * B * L * (mid * Cin + Cout * mid) + 10 * B * L * (mid + Cout)
    bytes_accessed = 4 * (B * Cin * L + mid * Cin + Cout * mid + B * Cout * L)
    vmem_spec = pl.BlockSpec(memory_space=pltpu.MemorySpace.VMEM)

    kernel = functools.partial(
        tf_decoder_kernel, inv_n=1.0 / float(B * L), matmul_dtype=matmul_dtype)

    return pl.pallas_call(
        kernel,
        out_shape=jax.ShapeDtypeStruct((B, Cout, L), jnp.float32),
        in_specs=[vmem_spec, vmem_spec, vmem_spec],
        out_specs=vmem_spec,
        cost_estimate=pl.CostEstimate(
            flops=flops, transcendentals=mid + Cout, bytes_accessed=bytes_accessed),
    )(x, w1, w2)


# ------------------------------ pure-JAX reference ------------------------------
# Includes the conv biases (as the PyTorch module has them); the kernel drops
# them because a training-mode BatchNorm cancels per-channel constants exactly.

def _ref_forward(x, w1, b1, w2, b2):
    def bn(y):
        mean = jnp.mean(y, axis=(0, 2), keepdims=True)
        var = jnp.mean((y - mean) ** 2, axis=(0, 2), keepdims=True)
        return (y - mean) * lax.rsqrt(var + EPS)

    h = jnp.einsum("oi,bil->bol", w1, x) + b1[None, :, None]
    h = jnp.maximum(bn(h), 0.0)
    y = jnp.einsum("oi,bil->bol", w2, h) + b2[None, :, None]
    return bn(y)


# ----------------------------------- main --------------------------------------

if __name__ == "__main__":
    # configs: final_out_channels=64, mid_channels=32, input_channels=8,
    #          feature (sequence) length=16, batch=2
    B, Cfin, mid, Cout, L = 2, 64, 32, 8, 16

    key = jax.random.PRNGKey(0)
    kx, k1, k2 = jax.random.split(key, 3)
    x = jax.random.normal(kx, (B, Cfin, L), jnp.float32)

    def conv1x1_init(k, co, ci):
        # PyTorch Conv1d default init (kernel_size=1): U(-1/sqrt(ci), 1/sqrt(ci))
        bound = 1.0 / (ci ** 0.5)
        kw, kb = jax.random.split(k)
        w = jax.random.uniform(kw, (co, ci), jnp.float32, -bound, bound)
        b = jax.random.uniform(kb, (co,), jnp.float32, -bound, bound)
        return w, b

    w1, b1 = conv1x1_init(k1, mid, Cfin)     # projection conv
    w2, b2 = conv1x1_init(k2, Cout, mid)     # reconstruction conv

    out = tf_decoder_forward(x, w1, w2)      # biases not needed: BN cancels them
    jax.block_until_ready(out)
    assert out.shape == (B, Cout, L)

    ref = _ref_forward(x, w1, b1, w2, b2)    # reference applies the biases
    assert jnp.allclose(out, ref, atol=1e-3, rtol=1e-3)

    print("KERNEL_OK")
</pallas_src>

<mosaic_0001>
module attributes {stable_mosaic.version = 11 : i64} {
  func.func @tf_decoder_kernel(%arg0: memref<2x64x16xf32, #tpu.memory_space<vmem>>, %arg1: memref<32x64xf32, #tpu.memory_space<vmem>>, %arg2: memref<8x32xf32, #tpu.memory_space<vmem>>, %arg3: memref<2x8x16xf32, #tpu.memory_space<vmem>>) attributes {dimension_semantics = [], scalar_prefetch = 0 : i64, scratch_operands = 0 : i64, tpu.core_type = #tpu.core_type<tc>} {
    %c0 = arith.constant 0 : index
    %c0_0 = arith.constant 0 : index
    %c0_1 = arith.constant 0 : index
    %0 = vector.load %arg0[%c0, %c0_0, %c0_1] : memref<2x64x16xf32, #tpu.memory_space<vmem>>, vector<2x64x16xf32>
    %c0_2 = arith.constant 0 : index
    %c0_3 = arith.constant 0 : index
    %1 = vector.load %arg1[%c0_2, %c0_3] : memref<32x64xf32, #tpu.memory_space<vmem>>, vector<32x64xf32>
    %2 = vector.shape_cast %1 : vector<32x64xf32> to vector<1x32x64xf32>
    %3 = vector.broadcast %2 : vector<1x32x64xf32> to vector<2x32x64xf32>
    %cst = arith.constant dense<0.000000e+00> : vector<2x32x16xf32>
    %4 = tpu.matmul %3, %0, %cst {dimension_numbers = #tpu.dot_dimension_numbers<[2], [1], [1], [2], [0, 0, 0, 1, 1, 2], [0], [0]>} : vector<2x32x64xf32>, vector<2x64x16xf32>, vector<2x32x16xf32> -> vector<2x32x16xf32>
    %cst_4 = arith.constant dense<0.000000e+00> : vector<2x32xf32>
    %5 = vector.multi_reduction <add>, %4, %cst_4 [2] : vector<2x32x16xf32> to vector<2x32xf32>
    %6 = vector.shape_cast %5 : vector<2x32xf32> to vector<2x32x1xf32>
    %cst_5 = arith.constant dense<0.000000e+00> : vector<32x1xf32>
    %7 = vector.multi_reduction <add>, %6, %cst_5 [0] : vector<2x32x1xf32> to vector<32x1xf32>
    %8 = vector.shape_cast %7 : vector<32x1xf32> to vector<1x32x1xf32>
    %9 = arith.mulf %4, %4 : vector<2x32x16xf32>
    %cst_6 = arith.constant dense<0.000000e+00> : vector<2x32xf32>
    %10 = vector.multi_reduction <add>, %9, %cst_6 [2] : vector<2x32x16xf32> to vector<2x32xf32>
    %11 = vector.shape_cast %10 : vector<2x32xf32> to vector<2x32x1xf32>
    %cst_7 = arith.constant dense<0.000000e+00> : vector<32x1xf32>
    %12 = vector.multi_reduction <add>, %11, %cst_7 [0] : vector<2x32x1xf32> to vector<32x1xf32>
    %13 = vector.shape_cast %12 : vector<32x1xf32> to vector<1x32x1xf32>
    %cst_8 = arith.constant 3.125000e-02 : f32
    %14 = vector.broadcast %cst_8 : f32 to vector<1x32x1xf32>
    %15 = arith.mulf %8, %14 : vector<1x32x1xf32>
    %cst_9 = arith.constant 3.125000e-02 : f32
    %16 = vector.broadcast %cst_9 : f32 to vector<1x32x1xf32>
    %17 = arith.mulf %13, %16 : vector<1x32x1xf32>
    %18 = arith.mulf %15, %15 : vector<1x32x1xf32>
    %19 = arith.subf %17, %18 : vector<1x32x1xf32>
    %cst_10 = arith.constant 0.000000e+00 : f32
    %20 = vector.broadcast %cst_10 : f32 to vector<1x32x1xf32>
    %21 = arith.maximumf %19, %20 : vector<1x32x1xf32>
    %22 = vector.broadcast %15 : vector<1x32x1xf32> to vector<2x32x16xf32>
    %23 = arith.subf %4, %22 : vector<2x32x16xf32>
    %cst_11 = arith.constant 9.99999974E-6 : f32
    %24 = vector.broadcast %cst_11 : f32 to vector<1x32x1xf32>
    %25 = arith.addf %21, %24 : vector<1x32x1xf32>
    %26 = math.rsqrt %25 : vector<1x32x1xf32>
    %27 = vector.broadcast %26 : vector<1x32x1xf32> to vector<2x32x16xf32>
    %28 = arith.mulf %23, %27 : vector<2x32x16xf32>
    %cst_12 = arith.constant 0.000000e+00 : f32
    %29 = vector.broadcast %cst_12 : f32 to vector<2x32x16xf32>
    %30 = arith.maximumf %28, %29 : vector<2x32x16xf32>
    %c0_13 = arith.constant 0 : index
    %c0_14 = arith.constant 0 : index
    %31 = vector.load %arg2[%c0_13, %c0_14] : memref<8x32xf32, #tpu.memory_space<vmem>>, vector<8x32xf32>
    %32 = vector.shape_cast %31 : vector<8x32xf32> to vector<1x8x32xf32>
    %33 = vector.broadcast %32 : vector<1x8x32xf32> to vector<2x8x32xf32>
    %cst_15 = arith.constant dense<0.000000e+00> : vector<2x8x16xf32>
    %34 = tpu.matmul %33, %30, %cst_15 {dimension_numbers = #tpu.dot_dimension_numbers<[2], [1], [1], [2], [0, 0, 0, 1, 1, 2], [0], [0]>} : vector<2x8x32xf32>, vector<2x32x16xf32>, vector<2x8x16xf32> -> vector<2x8x16xf32>
    %cst_16 = arith.constant dense<0.000000e+00> : vector<2x8xf32>
    %35 = vector.multi_reduction <add>, %34, %cst_16 [2] : vector<2x8x16xf32> to vector<2x8xf32>
    %36 = vector.shape_cast %35 : vector<2x8xf32> to vector<2x8x1xf32>
    %cst_17 = arith.constant dense<0.000000e+00> : vector<8x1xf32>
    %37 = vector.multi_reduction <add>, %36, %cst_17 [0] : vector<2x8x1xf32> to vector<8x1xf32>
    %38 = vector.shape_cast %37 : vector<8x1xf32> to vector<1x8x1xf32>
    %39 = arith.mulf %34, %34 : vector<2x8x16xf32>
    %cst_18 = arith.constant dense<0.000000e+00> : vector<2x8xf32>
    %40 = vector.multi_reduction <add>, %39, %cst_18 [2] : vector<2x8x16xf32> to vector<2x8xf32>
    %41 = vector.shape_cast %40 : vector<2x8xf32> to vector<2x8x1xf32>
    %cst_19 = arith.constant dense<0.000000e+00> : vector<8x1xf32>
    %42 = vector.multi_reduction <add>, %41, %cst_19 [0] : vector<2x8x1xf32> to vector<8x1xf32>
    %43 = vector.shape_cast %42 : vector<8x1xf32> to vector<1x8x1xf32>
    %cst_20 = arith.constant 3.125000e-02 : f32
    %44 = vector.broadcast %cst_20 : f32 to vector<1x8x1xf32>
    %45 = arith.mulf %38, %44 : vector<1x8x1xf32>
    %cst_21 = arith.constant 3.125000e-02 : f32
    %46 = vector.broadcast %cst_21 : f32 to vector<1x8x1xf32>
    %47 = arith.mulf %43, %46 : vector<1x8x1xf32>
    %48 = arith.mulf %45, %45 : vector<1x8x1xf32>
    %49 = arith.subf %47, %48 : vector<1x8x1xf32>
    %cst_22 = arith.constant 0.000000e+00 : f32
    %50 = vector.broadcast %cst_22 : f32 to vector<1x8x1xf32>
    %51 = arith.maximumf %49, %50 : vector<1x8x1xf32>
    %52 = vector.broadcast %45 : vector<1x8x1xf32> to vector<2x8x16xf32>
    %53 = arith.subf %34, %52 : vector<2x8x16xf32>
    %cst_23 = arith.constant 9.99999974E-6 : f32
    %54 = vector.broadcast %cst_23 : f32 to vector<1x8x1xf32>
    %55 = arith.addf %51, %54 : vector<1x8x1xf32>
    %56 = math.rsqrt %55 : vector<1x8x1xf32>
    %57 = vector.broadcast %56 : vector<1x8x1xf32> to vector<2x8x16xf32>
    %58 = arith.mulf %53, %57 : vector<2x8x16xf32>
    %c0_24 = arith.constant 0 : index
    %c0_25 = arith.constant 0 : index
    %c0_26 = arith.constant 0 : index
    %59 = vector.load %arg3[%c0_24, %c0_25, %c0_26] : memref<2x8x16xf32, #tpu.memory_space<vmem>>, vector<2x8x16xf32>
    tpu.vector_store %arg3[%c0_24, %c0_25, %c0_26], %58 {strides = array<i32>} : memref<2x8x16xf32, #tpu.memory_space<vmem>>, vector<2x8x16xf32>,
    return
  }
}

</mosaic_0001>

<llo_original>
// kernel: tpu_custom_call.1
$region0: #{tpu_custom_call.1}
  #allocation0 [shape = 'u32[]', space=smem, size = 0x4, offset = 0x4, fixed_abs, tag = 'smem constant byte address 0x4 - core index']
  #allocation1 [shape = 'u32[72,128]{1,0:T(1,128)}', space=vmem, size = 0x9000, scoped, tag = 'internal scratch']
  %s0 = inlined_call_operand.vmem [shape: f32[2,64,16], index: 0, kind: input, shape index: {}]
  %s1 = inlined_call_operand.vmem [shape: f32[32,64], index: 1, kind: input, shape index: {}]
  %s2 = inlined_call_operand.vmem [shape: f32[8,32], index: 2, kind: input, shape index: {}]
  %s3 = inlined_call_operand.hbm [shape: f32[2,8,16], index: 3, kind: output, shape index: {}]
  %s4 = sld [smem:[#allocation0]]
  $region22: #{tpu_custom_call.1} parent=0
    _
  %s6 = ssub.s32 1, %s4
  %s7 = scalar_select 0, %s6, %s4
  $region1: #{tpu_custom_call.1} parent=0
    #allocation2 [shape = 'u8[8192]{0}', space=vmem, size = 0x2000, scoped, tag = 'output window, operand 0, single buffered']
    #allocation3 [shape = 's32[1]{0}', space=sflag, size = 0x4, scoped, tag = 'scoped memory for tpu_custom_call.1']
    %8 = vsyncpa [#allocation3], 0
    // Predicated region
    $region2: #{tpu_custom_call.1} parent=1 // pred_check
      _
    $region3: #{tpu_custom_call.1} parent=1 // pred_check_branch
      %10 = sbr.rel (0) target = $region5
    $region4: #{tpu_custom_call.1} parent=1 // pred_region
      _
    $region5: #{tpu_custom_call.1} parent=1 // pred_fallthru
      _
    // Predicated region
    $region6: #{tpu_custom_call.1} parent=1 // pred_check
      _
    $region7: #{tpu_custom_call.1} parent=1 // pred_check_branch
      %12 = sbr.rel (0) target = $region9
    $region8: #{tpu_custom_call.1} parent=1 // pred_region
      _
    $region9: #{tpu_custom_call.1} parent=1 // pred_fallthru
      _
    // Predicated region
    $region10: #{tpu_custom_call.1} parent=1 // pred_check
      _
    $region11: #{tpu_custom_call.1} parent=1 // pred_check_branch
      %14 = sbr.rel (0) target = $region13
    $region12: #{tpu_custom_call.1} parent=1 // pred_region
      _
    $region13: #{tpu_custom_call.1} parent=1 // pred_fallthru
      _
    %v15 = vld [vmem:[%s0] sm:$0xff]
    %v16 = vld [vmem:[%s0 + $0x8] sm:$0xff]
    %v17 = vld [vmem:[%s0 + $0x10] sm:$0xff]
    %v18 = vld [vmem:[%s0 + $0x18] sm:$0xff]
    %v19 = vld [vmem:[%s0 + $0x20] sm:$0xff]
    %v20 = vld [vmem:[%s0 + $0x28] sm:$0xff]
    %v21 = vld [vmem:[%s0 + $0x30] sm:$0xff]
    %v22 = vld [vmem:[%s0 + $0x38] sm:$0xff]
    %v23 = vld [vmem:[%s0 + $0x40] sm:$0xff]
    %v24 = vld [vmem:[%s0 + $0x48] sm:$0xff]
    %v25 = vld [vmem:[%s0 + $0x50] sm:$0xff]
    %v26 = vld [vmem:[%s0 + $0x58] sm:$0xff]
    %v27 = vld [vmem:[%s0 + $0x60] sm:$0xff]
    %v28 = vld [vmem:[%s0 + $0x68] sm:$0xff]
    %v29 = vld [vmem:[%s0 + $0x70] sm:$0xff]
    %v30 = vld [vmem:[%s0 + $0x78] sm:$0xff]
    %v31 = vld [vmem:[%s1] sm:$0xff]
    %v32 = vld [vmem:[%s1 + $0x8] sm:$0xff]
    %v33 = vld [vmem:[%s1 + $0x10] sm:$0xff]
    %v34 = vld [vmem:[%s1 + $0x18] sm:$0xff]
    %vm35 = vcmask 523264
    %v37 = vsel %vm35, %v31, 0
    %v40 = vsel %vm35, %v32, 0
    %v43 = vsel %vm35, %v33, 0
    %v46 = vsel %vm35, %v34, 0
    %48 = vmatpush.msra.mxu0 0.0
    %49 = vmatpush.msra.mxu0 0.0
    %50 = vmatpush.msra.mxu0 0.0
    %51 = vmatpush.msra.mxu0 0.0
    %52 = vmatpush.msra.mxu0 0.0
    %53 = vmatpush.msra.mxu0 0.0
    %54 = vmatpush.msra.mxu0 0.0
    %55 = vmatpush.msra.mxu0 0.0
    %56 = vmatpush.msra.mxu0 %v22
    %57 = vmatpush.msra.mxu0 %v21
    %58 = vmatpush.msra.mxu0 %v20
    %59 = vmatpush.msra.mxu0 %v19
    %60 = vmatpush.msra.mxu0 %v18
    %61 = vmatpush.msra.mxu0 %v17
    %62 = vmatpush.msra.mxu0 %v16
    %63 = vmatpush.msra.mxu0 %v15
    %64 = vmatmul.f32.gmra.mxu0 %v37
    %v65 = vpop.f32.mrf.mxu0
    %v66 = vadd.f32 0.0, %v65
    %67 = vmatmul.f32.gmra.mxu0 %v40
    %v68 = vpop.f32.mrf.mxu0
    %v69 = vadd.f32 0.0, %v68
    %70 = vmatmul.f32.gmra.mxu0 %v43
    %v71 = vpop.f32.mrf.mxu0
    %v72 = vadd.f32 0.0, %v71
    %73 = vmatmul.f32.gmra.mxu0 %v46
    %v74 = vpop.f32.mrf.mxu0
    %v75 = vadd.f32 0.0, %v74
    %76 = vdwg.mxu0
    %77 = vmatpush.msra.mxu0 0.0
    %78 = vmatpush.msra.mxu0 0.0
    %79 = vmatpush.msra.mxu0 0.0
    %80 = vmatpush.msra.mxu0 0.0
    %81 = vmatpush.msra.mxu0 0.0
    %82 = vmatpush.msra.mxu0 0.0
    %83 = vmatpush.msra.mxu0 0.0
    %84 = vmatpush.msra.mxu0 0.0
    %85 = vmatpush.msra.mxu0 %v30
    %86 = vmatpush.msra.mxu0 %v29
    %87 = vmatpush.msra.mxu0 %v28
    %88 = vmatpush.msra.mxu0 %v27
    %89 = vmatpush.msra.mxu0 %v26
    %90 = vmatpush.msra.mxu0 %v25
    %91 = vmatpush.msra.mxu0 %v24
    %92 = vmatpush.msra.mxu0 %v23
    %93 = vmatmul.f32.gmra.mxu0 %v37
    %v94 = vpop.f32.mrf.mxu0
    %v95 = vadd.f32 0.0, %v94
    %96 = vmatmul.f32.gmra.mxu0 %v40
    %v97 = vpop.f32.mrf.mxu0
    %v98 = vadd.f32 0.0, %v97
    %99 = vmatmul.f32.gmra.mxu0 %v43
    %v100 = vpop.f32.mrf.mxu0
    %v101 = vadd.f32 0.0, %v100
    %102 = vmatmul.f32.gmra.mxu0 %v46
    %v103 = vpop.f32.mrf.mxu0
    %v104 = vadd.f32 0.0, %v103
    %105 = vdwg.mxu0
    %vm106 = vcmask 130048
    %v107 = vsel %vm106, %v66, 0.0
    %108 = vadd.xlane.f32.xlu0 %v107
    %v109 = vpop.xlane.xlu0 %108
    %v110 = vsel %vm106, %v69, 0.0
    %111 = vadd.xlane.f32.xlu0 %v110
    %v112 = vpop.xlane.xlu0 %111
    %v113 = vsel %vm106, %v72, 0.0
    %114 = vadd.xlane.f32.xlu0 %v113
    %v115 = vpop.xlane.xlu0 %114
    %v116 = vsel %vm106, %v75, 0.0
    %117 = vadd.xlane.f32.xlu0 %v116
    %v118 = vpop.xlane.xlu0 %117
    %v119 = vsel %vm106, %v95, 0.0
    %120 = vadd.xlane.f32.xlu0 %v119
    %v121 = vpop.xlane.xlu0 %120
    %v122 = vsel %vm106, %v98, 0.0
    %123 = vadd.xlane.f32.xlu0 %v122
    %v124 = vpop.xlane.xlu0 %123
    %v125 = vsel %vm106, %v101, 0.0
    %126 = vadd.xlane.f32.xlu0 %v125
    %v127 = vpop.xlane.xlu0 %126
    %v128 = vsel %vm106, %v104, 0.0
    %129 = vadd.xlane.f32.xlu0 %v128
    %v130 = vpop.xlane.xlu0 %129
    %v131 = vadd.f32 %v109, %v121
    %v132 = vadd.f32 %v112, %v124
    %v133 = vadd.f32 %v115, %v127
    %v134 = vadd.f32 %v118, %v130
    %v135 = vmul.f32 %v66, %v66
    %v136 = vmul.f32 %v69, %v69
    %v137 = vmul.f32 %v72, %v72
    %v138 = vmul.f32 %v75, %v75
    %v139 = vmul.f32 %v95, %v95
    %v140 = vmul.f32 %v98, %v98
    %v141 = vmul.f32 %v101, %v101
    %v142 = vmul.f32 %v104, %v104
    %v143 = vsel %vm106, %v135, 0.0
    %144 = vadd.xlane.f32.xlu0 %v143
    %v145 = vpop.xlane.xlu0 %144
    %v146 = vsel %vm106, %v136, 0.0
    %147 = vadd.xlane.f32.xlu0 %v146
    %v148 = vpop.xlane.xlu0 %147
    %v149 = vsel %vm106, %v137, 0.0
    %150 = vadd.xlane.f32.xlu0 %v149
    %v151 = vpop.xlane.xlu0 %150
    %v152 = vsel %vm106, %v138, 0.0
    %153 = vadd.xlane.f32.xlu0 %v152
    %v154 = vpop.xlane.xlu0 %153
    %v155 = vsel %vm106, %v139, 0.0
    %156 = vadd.xlane.f32.xlu0 %v155
    %v157 = vpop.xlane.xlu0 %156
    %v158 = vsel %vm106, %v140, 0.0
    %159 = vadd.xlane.f32.xlu0 %v158
    %v160 = vpop.xlane.xlu0 %159
    %v161 = vsel %vm106, %v141, 0.0
    %162 = vadd.xlane.f32.xlu0 %v161
    %v163 = vpop.xlane.xlu0 %162
    %v164 = vsel %vm106, %v142, 0.0
    %165 = vadd.xlane.f32.xlu0 %v164
    %v166 = vpop.xlane.xlu0 %165
    %v167 = vadd.f32 %v145, %v157
    %v168 = vadd.f32 %v148, %v160
    %v169 = vadd.f32 %v151, %v163
    %v170 = vadd.f32 %v154, %v166
    %v171 = vmul.f32 %v131, 0.03125
    %v172 = vmul.f32 %v132, 0.03125
    %v173 = vmul.f32 %v133, 0.03125
    %v174 = vmul.f32 %v134, 0.03125
    %v175 = vmul.f32 %v167, 0.03125
    %v176 = vmul.f32 %v168, 0.03125
    %v177 = vmul.f32 %v169, 0.03125
    %v178 = vmul.f32 %v170, 0.03125
    %v179 = vmul.f32 %v171, %v171
    %v180 = vmul.f32 %v172, %v172
    %v181 = vmul.f32 %v173, %v173
    %v182 = vmul.f32 %v174, %v174
    %v183 = vsub.f32 %v175, %v179
    %v184 = vsub.f32 %v176, %v180
    %v185 = vsub.f32 %v177, %v181
    %v186 = vsub.f32 %v178, %v182
    %v187 = vmax.f32 %v183, 0.0
    %v188 = vmax.f32 %v184, 0.0
    %v189 = vmax.f32 %v185, 0.0
    %v190 = vmax.f32 %v186, 0.0
    %v191 = vsub.f32 %v66, %v171
    %v192 = vsub.f32 %v69, %v172
    %v193 = vsub.f32 %v72, %v173
    %v194 = vsub.f32 %v75, %v174
    %v195 = vsub.f32 %v95, %v171
    %v196 = vsub.f32 %v98, %v172
    %v197 = vsub.f32 %v101, %v173
    %v198 = vsub.f32 %v104, %v174
    %v199 = vadd.f32 %v187, 1e-05
    %v200 = vadd.f32 %v188, 1e-05
    %v201 = vadd.f32 %v189, 1e-05
    %v202 = vadd.f32 %v190, 1e-05
    %v203 = vrsqrt.pop %v199
    %v204 = vmul.f32 %v203, %v199
    %v205 = vmul.f32 %v204, %v203
    %v206 = vmul.f32 0.5, %v205
    %v207 = vsub.f32 1.5, %v206
    %v208 = vmul.f32 %v203, %v207
    %vm209 = vweird.f32 %v199
    %vm210 = vweird.f32 %v203
    %vm211 = vmor %vm209, %vm210
    %v212 = vsel %vm211, %v203, %v208
    %v213 = vrsqrt.pop %v200
    %v214 = vmul.f32 %v213, %v200
    %v215 = vmul.f32 %v214, %v213
    %v216 = vmul.f32 0.5, %v215
    %v217 = vsub.f32 1.5, %v216
    %v218 = vmul.f32 %v213, %v217
    %vm219 = vweird.f32 %v200
    %vm220 = vweird.f32 %v213
    %vm221 = vmor %vm219, %vm220
    %v222 = vsel %vm221, %v213, %v218
    %v223 = vrsqrt.pop %v201
    %v224 = vmul.f32 %v223, %v201
    %v225 = vmul.f32 %v224, %v223
    %v226 = vmul.f32 0.5, %v225
    %v227 = vsub.f32 1.5, %v226
    %v228 = vmul.f32 %v223, %v227
    %vm229 = vweird.f32 %v201
    %vm230 = vweird.f32 %v223
    %vm231 = vmor %vm229, %vm230
    %v232 = vsel %vm231, %v223, %v228
    %v233 = vrsqrt.pop %v202
    %v234 = vmul.f32 %v233, %v202
    %v235 = vmul.f32 %v234, %v233
    %v236 = vmul.f32 0.5, %v235
    %v237 = vsub.f32 1.5, %v236
    %v238 = vmul.f32 %v233, %v237
    %vm239 = vweird.f32 %v202
    %vm240 = vweird.f32 %v233
    %vm241 = vmor %vm239, %vm240
    %v242 = vsel %vm241, %v233, %v238
    %v243 = vmul.f32 %v191, %v212
    %v244 = vmul.f32 %v192, %v222
    %v245 = vmul.f32 %v193, %v232
    %v246 = vmul.f32 %v194, %v242
    %v247 = vmul.f32 %v195, %v212
    %v248 = vmul.f32 %v196, %v222
    %v249 = vmul.f32 %v197, %v232
    %v250 = vmul.f32 %v198, %v242
    %v251 = vmax.f32 %v243, 0.0
    %v252 = vmax.f32 %v244, 0.0
    %v253 = vmax.f32 %v245, 0.0
    %v254 = vmax.f32 %v246, 0.0
    %v255 = vmax.f32 %v247, 0.0
    %v256 = vmax.f32 %v248, 0.0
    %v257 = vmax.f32 %v249, 0.0
    %v258 = vmax.f32 %v250, 0.0
    %v259 = vld [vmem:[%s2] sm:$0xff]
    %vm260 = vcmask 261120
    %v262 = vsel %vm260, %v259, 0
    %264 = vmatpush.msra.mxu0 0.0
    %265 = vmatpush.msra.mxu0 0.0
    %266 = vmatpush.msra.mxu0 0.0
    %267 = vmatpush.msra.mxu0 0.0
    %268 = vmatpush.msra.mxu0 0.0
    %269 = vmatpush.msra.mxu0 0.0
    %270 = vmatpush.msra.mxu0 0.0
    %271 = vmatpush.msra.mxu0 0.0
    %272 = vmatpush.msra.mxu0 0.0
    %273 = vmatpush.msra.mxu0 0.0
    %274 = vmatpush.msra.mxu0 0.0
    %275 = vmatpush.msra.mxu0 0.0
    %276 = vmatpush.msra.mxu0 %v254
    %277 = vmatpush.msra.mxu0 %v253
    %278 = vmatpush.msra.mxu0 %v252
    %279 = vmatpush.msra.mxu0 %v251
    %280 = vmatmul.f32.gmra.mxu0 %v262
    %v281 = vpop.f32.mrf.mxu0
    %v282 = vadd.f32 0.0, %v281
    %283 = vdwg.mxu0
    %284 = vmatpush.msra.mxu0 0.0
    %285 = vmatpush.msra.mxu0 0.0
    %286 = vmatpush.msra.mxu0 0.0
    %287 = vmatpush.msra.mxu0 0.0
    %288 = vmatpush.msra.mxu0 0.0
    %289 = vmatpush.msra.mxu0 0.0
    %290 = vmatpush.msra.mxu0 0.0
    %291 = vmatpush.msra.mxu0 0.0
    %292 = vmatpush.msra.mxu0 0.0
    %293 = vmatpush.msra.mxu0 0.0
    %294 = vmatpush.msra.mxu0 0.0
    %295 = vmatpush.msra.mxu0 0.0
    %296 = vmatpush.msra.mxu0 %v258
    %297 = vmatpush.msra.mxu0 %v257
    %298 = vmatpush.msra.mxu0 %v256
    %299 = vmatpush.msra.mxu0 %v255
    %300 = vmatmul.f32.gmra.mxu0 %v262
    %v301 = vpop.f32.mrf.mxu0
    %v302 = vadd.f32 0.0, %v301
    %303 = vdwg.mxu0
    %v304 = vsel %vm106, %v282, 0.0
    %305 = vadd.xlane.f32.xlu0 %v304
    %v306 = vpop.xlane.xlu0 %305
    %v307 = vsel %vm106, %v302, 0.0
    %308 = vadd.xlane.f32.xlu0 %v307
    %v309 = vpop.xlane.xlu0 %308
    %v310 = vadd.f32 %v306, %v309
    %v311 = vmul.f32 %v282, %v282
    %v312 = vmul.f32 %v302, %v302
    %v313 = vsel %vm106, %v311, 0.0
    %314 = vadd.xlane.f32.xlu0 %v313
    %v315 = vpop.xlane.xlu0 %314
    %v316 = vsel %vm106, %v312, 0.0
    %317 = vadd.xlane.f32.xlu0 %v316
    %v318 = vpop.xlane.xlu0 %317
    %v319 = vadd.f32 %v315, %v318
    %v320 = vmul.f32 %v310, 0.03125
    %v321 = vmul.f32 %v319, 0.03125
    %v322 = vmul.f32 %v320, %v320
    %v323 = vsub.f32 %v321, %v322
    %v324 = vmax.f32 %v323, 0.0
    %v325 = vsub.f32 %v282, %v320
    %v326 = vsub.f32 %v302, %v320
    %v327 = vadd.f32 %v324, 1e-05
    %v328 = vrsqrt.pop %v327
    %v329 = vmul.f32 %v328, %v327
    %v330 = vmul.f32 %v329, %v328
    %v331 = vmul.f32 0.5, %v330
    %v332 = vsub.f32 1.5, %v331
    %v333 = vmul.f32 %v328, %v332
    %vm334 = vweird.f32 %v327
    %vm335 = vweird.f32 %v328
    %vm336 = vmor %vm334, %vm335
    %v337 = vsel %vm336, %v328, %v333
    %v338 = vmul.f32 %v325, %v337
    %v339 = vmul.f32 %v326, %v337
    %340 = vst.msk [vmem:[#allocation2] sm:$0xff] %vm106, %v338
    %341 = vst.msk [vmem:[#allocation2 + $0x8] sm:$0xff] %vm106, %v339
    // Predicated region
    $region14: #{tpu_custom_call.1} parent=1 // pred_check
      _
    $region15: #{tpu_custom_call.1} parent=1 // pred_check_branch
      %343 = sbr.rel (0) target = $region17
    $region16: #{tpu_custom_call.1} parent=1 // pred_region
      %345 = vsyncadd [#allocation3], 0
      %s346 = sshll.u32 [#allocation2], 4
      %s347 = int_to_ptr.vmem [resolvable:$true] %s346
      %s348 = sshll.u32 %s3, 4
      %s349 = int_to_ptr.hbm [resolvable:$true] %s348
      %354 = dma.vmem_to_hbm [thread:$0]  %s347, 256, %s349, [#allocation3], 128, 128, 8
    $region17: #{tpu_custom_call.1} parent=1 // pred_fallthru
      _
    // Predicated region
    $region18: #{tpu_custom_call.1} parent=1 // pred_check
      _
    $region19: #{tpu_custom_call.1} parent=1 // pred_check_branch
      %356 = sbr.rel (0) target = $region21
    $region20: #{tpu_custom_call.1} parent=1 // pred_region
      %358 = dma.done [#allocation3], 256
    $region21: #{tpu_custom_call.1} parent=1 // pred_fallthru
      _
    %359 = vsyncpa [#allocation3], 1

</llo_original>
